<compile_context>
chip_gen: v7x
topology: tpu7x:2x2x1
jax: 0.10.0
libtpu: 0.0.40
codegen_flags: <defaults>
</compile_context>

<pallas_src>
import math
import functools

import jax
import jax.numpy as jnp
from jax.experimental import pallas as pl
from jax.experimental.pallas import tpu as pltpu


# ----------------------------------------------------------------------------
# Helpers
# ----------------------------------------------------------------------------
def _choose_tile(dim, preferred, unit):
    """Largest tile <= preferred that divides dim and is a multiple of unit.

    Falls back to the full dim (Pallas full-dim escape hatch) when the dim is
    not a multiple of the hardware unit (small test shapes)."""
    if dim % unit != 0:
        return dim
    t = min(preferred, dim)
    t -= t % unit
    while dim % t != 0:
        t -= unit
    return t


def _vmem_limit_bytes():
    """~3/4 of physical VMEM: ~96 MiB on v5e/v6e (128 MiB), ~48 MiB on v7x (64 MiB)."""
    cap = 128 * 1024 * 1024
    try:
        info = pltpu.get_tpu_info()
        cap = int(getattr(info, "vmem_capacity_bytes", cap))
    except Exception:
        pass
    return int(cap * 3 // 4)


# ----------------------------------------------------------------------------
# Tiled linear (x @ W + b) kernel
# ----------------------------------------------------------------------------
def _linear_kernel(x_ref, w_ref, b_ref, o_ref, acc_ref):
    @pl.when(pl.program_id(2) == 0)
    def _():
        acc_ref[...] = jnp.zeros_like(acc_ref)

    acc_ref[...] += jnp.dot(x_ref[...], w_ref[...],
                            preferred_element_type=jnp.float32)

    @pl.when(pl.program_id(2) == pl.num_programs(2) - 1)
    def _():
        o_ref[...] = (acc_ref[...] + b_ref[...].astype(jnp.float32)
                      ).astype(o_ref.dtype)


def linear(x2d, w, b, *, tm=512, tn=512, tk=512):
    """x2d: (M, K), w: (K, N), b: (N,) -> (M, N) = x2d @ w + b."""
    M, K = x2d.shape
    K2, N = w.shape
    assert K == K2

    tm = _choose_tile(M, tm, 8)     # sublane-dim tile
    tn = _choose_tile(N, tn, 128)   # lane-dim tile
    tk = _choose_tile(K, tk, 128)   # contraction tile
    grid = (M // tm, N // tn, K // tk)

    return pl.pallas_call(
        _linear_kernel,
        out_shape=jax.ShapeDtypeStruct((M, N), x2d.dtype),
        grid_spec=pltpu.PrefetchScalarGridSpec(
            num_scalar_prefetch=0,
            grid=grid,
            in_specs=[
                pl.BlockSpec((tm, tk), lambda i, j, k: (i, k)),
                pl.BlockSpec((tk, tn), lambda i, j, k: (k, j)),
                pl.BlockSpec((1, tn), lambda i, j, k: (0, j)),
            ],
            out_specs=pl.BlockSpec((tm, tn), lambda i, j, k: (i, j)),
            scratch_shapes=[pltpu.VMEM((tm, tn), jnp.float32)],
        ),
        compiler_params=pltpu.CompilerParams(
            dimension_semantics=("parallel", "parallel", "arbitrary"),
            vmem_limit_bytes=_vmem_limit_bytes(),
        ),
    )(x2d, w, b.reshape(1, N))


# ----------------------------------------------------------------------------
# Flash-style KV-tiled causal attention kernel
#   grid = (B, n_head, T//tq, T//tkv); kv is the (last, "arbitrary") reduction
#   axis; running max / sum / accumulator live in VMEM scratch.
# ----------------------------------------------------------------------------
def _flash_attn_kernel(q_ref, k_ref, v_ref, o_ref, m_scr, l_scr, acc_scr,
                       *, tq, tkv, scale):
    ki = pl.program_id(3)

    @pl.when(ki == 0)
    def _init():
        m_scr[...] = jnp.full_like(m_scr, -jnp.inf)
        l_scr[...] = jnp.zeros_like(l_scr)
        acc_scr[...] = jnp.zeros_like(acc_scr)

    qi = pl.program_id(2)
    q_start = qi * tq
    kv_start = ki * tkv

    # Causal tile skipping: KV tiles entirely above the diagonal contribute
    # nothing. Their compute is skipped here; their DMA is elided because the
    # kv index_map clamps the block index (same block stays resident).
    @pl.when(kv_start <= q_start + (tq - 1))
    def _compute():
        q = q_ref[0, 0]                      # (tq, hd), input dtype (MXU operand)
        k = k_ref[0, 0]                      # (tkv, hd)
        v = v_ref[0, 0]                      # (tkv, hd)

        # scores: contract on hd (no explicit transpose); scale in f32 so
        # low-precision inputs keep full mantissa through the softmax path.
        s = jax.lax.dot_general(
            q, k, dimension_numbers=(((1,), (1,)), ((), ())),
            preferred_element_type=jnp.float32) * jnp.float32(scale)  # (tq,tkv)

        # per-tile causal mask from program ids; for tiles fully below the
        # diagonal `needs_mask` is False and the select is a no-op (cheap VPU).
        needs_mask = kv_start + (tkv - 1) > q_start
        row = q_start + jax.lax.broadcasted_iota(jnp.int32, (tq, tkv), 0)
        col = kv_start + jax.lax.broadcasted_iota(jnp.int32, (tq, tkv), 1)
        keep = jnp.logical_or(jnp.logical_not(needs_mask), col <= row)
        s = jnp.where(keep, s, jnp.float32(-1e30))

        # online softmax update (all f32)
        m_prev = m_scr[...]                                   # (tq, 1)
        m_new = jnp.maximum(m_prev, jnp.max(s, axis=-1, keepdims=True))
        alpha = jnp.exp(m_prev - m_new)
        p = jnp.exp(s - m_new)
        l_scr[...] = alpha * l_scr[...] + jnp.sum(p, axis=-1, keepdims=True)
        acc_scr[...] = alpha * acc_scr[...] + jax.lax.dot_general(
            p.astype(v.dtype), v,
            dimension_numbers=(((1,), (0,)), ((), ())),
            preferred_element_type=jnp.float32)               # (tq, hd)
        m_scr[...] = m_new

    @pl.when(ki == pl.num_programs(3) - 1)
    def _finalize():
        # exact divide: denominator is only (tq, 1), approx reciprocal buys
        # nothing and costs accuracy.
        o_ref[0, 0] = (acc_scr[...] / l_scr[...]).astype(o_ref.dtype)


def flash_causal_attention(q, k, v, *, tq=256, tkv=256):
    """q,k,v: (B, n_head, T, hd) -> (B, n_head, T, hd) causal attention."""
    B, H, T, hd = q.shape
    tq = _choose_tile(T, tq, 8)
    tkv = _choose_tile(T, tkv, 8)
    nq, nkv = T // tq, T // tkv
    scale = 1.0 / math.sqrt(hd)

    def q_map(b, h, qi, ki):
        return (b, h, qi, 0)

    def kv_map(b, h, qi, ki):
        # clamp skipped (fully-above-diagonal) kv tiles to the last needed one
        # so Pallas sees an unchanged block index and elides the DMA.
        last_needed = ((qi + 1) * tq - 1) // tkv
        return (b, h, jnp.minimum(ki, last_needed), 0)

    def o_map(b, h, qi, ki):
        return (b, h, qi, 0)

    kernel = functools.partial(_flash_attn_kernel, tq=tq, tkv=tkv, scale=scale)
    return pl.pallas_call(
        kernel,
        out_shape=jax.ShapeDtypeStruct((B, H, T, hd), q.dtype),
        grid_spec=pltpu.PrefetchScalarGridSpec(
            num_scalar_prefetch=0,
            grid=(B, H, nq, nkv),
            in_specs=[
                pl.BlockSpec((1, 1, tq, hd), q_map),
                pl.BlockSpec((1, 1, tkv, hd), kv_map),
                pl.BlockSpec((1, 1, tkv, hd), kv_map),
            ],
            out_specs=pl.BlockSpec((1, 1, tq, hd), o_map),
            scratch_shapes=[
                pltpu.VMEM((tq, 1), jnp.float32),    # running max
                pltpu.VMEM((tq, 1), jnp.float32),    # running sum
                pltpu.VMEM((tq, hd), jnp.float32),   # output accumulator
            ],
        ),
        compiler_params=pltpu.CompilerParams(
            dimension_semantics=("parallel", "parallel", "parallel", "arbitrary"),
            vmem_limit_bytes=_vmem_limit_bytes(),
        ),
    )(q, k, v)


# ----------------------------------------------------------------------------
# Module forward
# ----------------------------------------------------------------------------
def casual_self_attention(x, params, n_head):
    B, T, C = x.shape
    assert C % n_head == 0
    hd = C // n_head

    # qkv projection (tiled Pallas GEMM, bias fused in finalize)
    qkv = linear(x.reshape(B * T, C), params["w_attn"], params["b_attn"])
    # head split (q|k|v blocks of C columns each, per torch split+view), done
    # once in XLA so the attention kernel sees lane-dense (T, hd) head blocks.
    qkv = qkv.reshape(B, T, 3, n_head, hd)
    q = qkv[:, :, 0].transpose(0, 2, 1, 3)     # (B, n_head, T, hd)
    k = qkv[:, :, 1].transpose(0, 2, 1, 3)
    v = qkv[:, :, 2].transpose(0, 2, 1, 3)

    # flash-style KV-tiled causal attention
    y = flash_causal_attention(q, k, v)        # (B, n_head, T, hd)
    y = y.transpose(0, 2, 1, 3).reshape(B * T, C)

    # output projection
    out = linear(y, params["w_proj"], params["b_proj"])
    return out.reshape(B, T, C)


# ----------------------------------------------------------------------------
# Pure-JAX reference for verification
# ----------------------------------------------------------------------------
def reference(x, params, n_head):
    B, T, C = x.shape
    hd = C // n_head
    qkv = x @ params["w_attn"] + params["b_attn"]
    q, k, v = jnp.split(qkv, 3, axis=2)
    q = q.reshape(B, T, n_head, hd).transpose(0, 2, 1, 3)
    k = k.reshape(B, T, n_head, hd).transpose(0, 2, 1, 3)
    v = v.reshape(B, T, n_head, hd).transpose(0, 2, 1, 3)
    s = jnp.einsum("bhqd,bhkd->bhqk", q, k) / math.sqrt(hd)
    mask = jnp.tril(jnp.ones((T, T), dtype=bool))
    s = jnp.where(mask[None, None], s, -jnp.inf)
    a = jax.nn.softmax(s, axis=-1)
    y = jnp.einsum("bhqk,bhkd->bhqd", a, v)
    y = y.transpose(0, 2, 1, 3).reshape(B, T, C)
    return y @ params["w_proj"] + params["b_proj"]


# ----------------------------------------------------------------------------
# Main
# ----------------------------------------------------------------------------
if __name__ == "__main__":
    # config: n_embd=32, n_head=4, bias=True, dropout=0.0, block_size >= T
    B, T, C, n_head = 2, 8, 32, 4

    key = jax.random.PRNGKey(0)
    k_x, k_wa, k_ba, k_wp, k_bp = jax.random.split(key, 5)

    x = jax.random.normal(k_x, (B, T, C), dtype=jnp.float32)
    params = {
        # stored as (in, out); torch Linear.weight would be the transpose
        "w_attn": 0.02 * jax.random.normal(k_wa, (C, 3 * C), dtype=jnp.float32),
        "b_attn": 0.02 * jax.random.normal(k_ba, (3 * C,), dtype=jnp.float32),
        "w_proj": 0.02 * jax.random.normal(k_wp, (C, C), dtype=jnp.float32),
        "b_proj": 0.02 * jax.random.normal(k_bp, (C,), dtype=jnp.float32),
    }

    out = casual_self_attention(x, params, n_head)
    out = jax.block_until_ready(out)

    ref = reference(x, params, n_head)
    assert out.shape == (B, T, C)
    assert jnp.allclose(out, ref, atol=1e-4, rtol=1e-4), "mismatch vs reference"

    print("KERNEL_OK")
</pallas_src>

<mosaic_0001>
module attributes {stable_mosaic.version = 11 : i64} {
  func.func @_linear_kernel(%arg0: i32, %arg1: i32, %arg2: i32, %arg3: memref<16x32xf32, #tpu.memory_space<vmem>>, %arg4: memref<32x96xf32, #tpu.memory_space<vmem>>, %arg5: memref<1x96xf32, #tpu.memory_space<vmem>>, %arg6: memref<16x96xf32, #tpu.memory_space<vmem>>, %arg7: memref<16x96xf32, #tpu.memory_space<vmem>>) attributes {dimension_semantics = [#tpu.dimension_semantics<parallel>, #tpu.dimension_semantics<parallel>, #tpu.dimension_semantics<arbitrary>], iteration_bounds = array<i64: 1, 1, 1>, scalar_prefetch = 0 : i64, scratch_operands = 1 : i64, tpu.core_type = #tpu.core_type<tc>, window_params = [{transform_indices = @transform_0, window_bounds = array<i64: 16, 32>}, {transform_indices = @transform_1, window_bounds = array<i64: 32, 96>}, {transform_indices = @transform_2, window_bounds = array<i64: 1, 96>}, {transform_indices = @transform_3, window_bounds = array<i64: 16, 96>}]} {
    %c0_i32 = arith.constant 0 : i32
    %0 = arith.cmpi eq, %arg2, %c0_i32 : i32
    %1 = arith.extui %0 : i1 to i32
    %c0_i32_0 = arith.constant 0 : i32
    %2 = arith.cmpi ne, %1, %c0_i32_0 : i32
    scf.if %2 {
      %cst_10 = arith.constant 0.000000e+00 : f32
      %12 = vector.broadcast %cst_10 : f32 to vector<16x96xf32>
      %c0_11 = arith.constant 0 : index
      %c0_12 = arith.constant 0 : index
      %13 = vector.load %arg7[%c0_11, %c0_12] : memref<16x96xf32, #tpu.memory_space<vmem>>, vector<16x96xf32>
      tpu.vector_store %arg7[%c0_11, %c0_12], %12 {strides = array<i32>} : memref<16x96xf32, #tpu.memory_space<vmem>>, vector<16x96xf32>,
    } else {
    }
    %c0 = arith.constant 0 : index
    %c0_1 = arith.constant 0 : index
    %3 = vector.load %arg7[%c0, %c0_1] : memref<16x96xf32, #tpu.memory_space<vmem>>, vector<16x96xf32>
    %c0_2 = arith.constant 0 : index
    %c0_3 = arith.constant 0 : index
    %4 = vector.load %arg3[%c0_2, %c0_3] : memref<16x32xf32, #tpu.memory_space<vmem>>, vector<16x32xf32>
    %c0_4 = arith.constant 0 : index
    %c0_5 = arith.constant 0 : index
    %5 = vector.load %arg4[%c0_4, %c0_5] : memref<32x96xf32, #tpu.memory_space<vmem>>, vector<32x96xf32>
    %cst = arith.constant dense<0.000000e+00> : vector<16x96xf32>
    %6 = tpu.matmul %4, %5, %cst {dimension_numbers = #tpu.dot_dimension_numbers<[1], [0], [0], [1], [0, 0, 1, 1], [], []>} : vector<16x32xf32>, vector<32x96xf32>, vector<16x96xf32> -> vector<16x96xf32>
    %7 = arith.addf %3, %6 : vector<16x96xf32>
    %c0_6 = arith.constant 0 : index
    %c0_7 = arith.constant 0 : index
    %8 = vector.load %arg7[%c0_6, %c0_7] : memref<16x96xf32, #tpu.memory_space<vmem>>, vector<16x96xf32>
    tpu.vector_store %arg7[%c0_6, %c0_7], %7 {strides = array<i32>} : memref<16x96xf32, #tpu.memory_space<vmem>>, vector<16x96xf32>,
    %c0_i32_8 = arith.constant 0 : i32
    %9 = arith.cmpi eq, %arg2, %c0_i32_8 : i32
    %10 = arith.extui %9 : i1 to i32
    %c0_i32_9 = arith.constant 0 : i32
    %11 = arith.cmpi ne, %10, %c0_i32_9 : i32
    scf.if %11 {
      %c0_10 = arith.constant 0 : index
      %c0_11 = arith.constant 0 : index
      %12 = vector.load %arg7[%c0_10, %c0_11] : memref<16x96xf32, #tpu.memory_space<vmem>>, vector<16x96xf32>
      %c0_12 = arith.constant 0 : index
      %c0_13 = arith.constant 0 : index
      %13 = vector.load %arg5[%c0_12, %c0_13] : memref<1x96xf32, #tpu.memory_space<vmem>>, vector<1x96xf32>
      %14 = vector.broadcast %13 : vector<1x96xf32> to vector<16x96xf32>
      %15 = arith.addf %12, %14 : vector<16x96xf32>
      %c0_14 = arith.constant 0 : index
      %c0_15 = arith.constant 0 : index
      %16 = vector.load %arg6[%c0_14, %c0_15] : memref<16x96xf32, #tpu.memory_space<vmem>>, vector<16x96xf32>
      tpu.vector_store %arg6[%c0_14, %c0_15], %15 {strides = array<i32>} : memref<16x96xf32, #tpu.memory_space<vmem>>, vector<16x96xf32>,
    } else {
    }
    return
  }
  func.func @transform_0(%arg0: i32, %arg1: i32, %arg2: i32) -> (i32, i32) {
    %c0_i32 = arith.constant 0 : i32
    return %arg0, %arg2 : i32, i32
  }
  func.func @transform_1(%arg0: i32, %arg1: i32, %arg2: i32) -> (i32, i32) {
    %c0_i32 = arith.constant 0 : i32
    return %arg2, %arg1 : i32, i32
  }
  func.func @transform_2(%arg0: i32, %arg1: i32, %arg2: i32) -> (i32, i32) {
    %c0_i32 = arith.constant 0 : i32
    %c0_i32_0 = arith.constant 0 : i32
    return %c0_i32, %arg1 : i32, i32
  }
  func.func @transform_3(%arg0: i32, %arg1: i32, %arg2: i32) -> (i32, i32) {
    %c0_i32 = arith.constant 0 : i32
    return %arg0, %arg1 : i32, i32
  }
}

</mosaic_0001>

<llo_original>
// kernel: tpu_custom_call.1
$region0: #{tpu_custom_call.1}
  #allocation0 [shape = 'u32[]', space=smem, size = 0x4, offset = 0x4, fixed_abs, tag = 'smem constant byte address 0x4 - core index']
  #allocation1 [shape = 'u32[144,128]{1,0:T(1,128)}', space=vmem, size = 0x12000, scoped, tag = 'internal scratch']
  #allocation2 [shape = 'f32[16,96]{1,0:T(8,128)}', space=vmem, size = 0x2000, scoped, tag = 'scratch operand']
  %s0 = inlined_call_operand.hbm [shape: f32[16,32], index: 0, kind: input, shape index: {}]
  %s1 = inlined_call_operand.hbm [shape: f32[32,96], index: 1, kind: input, shape index: {}]
  %s2 = inlined_call_operand.hbm [shape: f32[1,96], index: 2, kind: input, shape index: {}]
  %s3 = inlined_call_operand.hbm [shape: f32[16,96], index: 3, kind: output, shape index: {}]
  %s4 = sld [smem:[#allocation0]]
  $region42: #{tpu_custom_call.1} parent=0
    _
  %s6 = ssub.s32 1, %s4
  %s7 = scalar_select 0, %s6, %s4
  $region1: #{tpu_custom_call.1} parent=0
    #allocation3 [shape = 'u8[8192]{0}', space=vmem, size = 0x2000, scoped, tag = 'input window, operand 0, single buffered']
    #allocation4 [shape = 's32[1]{0}', space=sflag, size = 0x4, scoped, tag = 'scoped memory for tpu_custom_call.1']
    #allocation5 [shape = 's32[1]{0}', space=sflag, size = 0x4, scoped, tag = 'scoped memory for tpu_custom_call.1']
    #allocation6 [shape = 'u8[16384]{0}', space=vmem, size = 0x4000, scoped, tag = 'input window, operand 1, single buffered']
    #allocation7 [shape = 's32[1]{0}', space=sflag, size = 0x4, scoped, tag = 'scoped memory for tpu_custom_call.1']
    #allocation8 [shape = 'u8[512]{0}', space=vmem, size = 0x400, scoped, tag = 'input window, operand 2, single buffered']
    #allocation9 [shape = 'u8[8192]{0}', space=vmem, size = 0x2000, scoped, tag = 'output window, operand 0, single buffered']
    %8 = vsyncpa [#allocation4], 0
    %9 = vsyncpa [#allocation7], 0
    %10 = vsyncpa [#allocation5], 0
    // Predicated region
    $region2: #{tpu_custom_call.1} parent=1 // pred_check
      _
    $region3: #{tpu_custom_call.1} parent=1 // pred_check_branch
      %12 = sbr.rel (0) target = $region5
    $region4: #{tpu_custom_call.1} parent=1 // pred_region
      %s14 = ssub.s32 256, 256
      %15 = vsyncadd [#allocation4], %s14
      %s16 = sshll.u32 [#allocation3], 4
      %s17 = int_to_ptr.vmem [resolvable:$true] %s16
      %22 = dma.hbm_to_vmem [thread:$0]  %s0, 256, %s17, [#allocation4], 128, 128, 8
    $region5: #{tpu_custom_call.1} parent=1 // pred_fallthru
      _
    // Predicated region
    $region6: #{tpu_custom_call.1} parent=1 // pred_check
      _
    $region7: #{tpu_custom_call.1} parent=1 // pred_check_branch
      %24 = sbr.rel (0) target = $region9
    $region8: #{tpu_custom_call.1} parent=1 // pred_region
      %s26 = ssub.s32 512, 512
      %27 = vsyncadd [#allocation7], %s26
      %s28 = sshll.u32 [#allocation6], 4
      %s29 = int_to_ptr.vmem [resolvable:$true] %s28
      %34 = dma.hbm_to_vmem [thread:$0]  %s1, 512, %s29, [#allocation7], 128, 128, 8
    $region9: #{tpu_custom_call.1} parent=1 // pred_fallthru
      _
    // Predicated region
    $region10: #{tpu_custom_call.1} parent=1 // pred_check
      _
    $region11: #{tpu_custom_call.1} parent=1 // pred_check_branch
      %36 = sbr.rel (0) target = $region13
    $region12: #{tpu_custom_call.1} parent=1 // pred_region
      %s38 = ssub.s32 16, 16
      %39 = vsyncadd [#allocation7], %s38
      %s41 = sshll.u32 [#allocation8], 4
      %s42 = int_to_ptr.vmem [resolvable:$true] %s41
      %44 = dma.hbm_to_vmem [thread:$0]  %s2, 16, %s42, [#allocation7]
    $region13: #{tpu_custom_call.1} parent=1 // pred_fallthru
      _
    // Predicated region
    $region14: #{tpu_custom_call.1} parent=1 // pred_check
      _
    $region15: #{tpu_custom_call.1} parent=1 // pred_check_branch
      %46 = sbr.rel (0) target = $region17
    $region16: #{tpu_custom_call.1} parent=1 // pred_region
      %47 = dma.done [#allocation4], 256
    $region17: #{tpu_custom_call.1} parent=1 // pred_fallthru
      _
    // Predicated region
    $region18: #{tpu_custom_call.1} parent=1 // pred_check
      _
    $region19: #{tpu_custom_call.1} parent=1 // pred_check_branch
      %49 = sbr.rel (0) target = $region21
    $region20: #{tpu_custom_call.1} parent=1 // pred_region
      %50 = dma.done [#allocation7], 512
    $region21: #{tpu_custom_call.1} parent=1 // pred_fallthru
      _
    // Predicated region
    $region22: #{tpu_custom_call.1} parent=1 // pred_check
      _
    $region23: #{tpu_custom_call.1} parent=1 // pred_check_branch
      %52 = sbr.rel (0) target = $region25
    $region24: #{tpu_custom_call.1} parent=1 // pred_region
      %53 = dma.done [#allocation7], 16
    $region25: #{tpu_custom_call.1} parent=1 // pred_fallthru
      _
    %p54 = scmp.eq.s32.totalorder 0, 0
    // Predicated region
    $region26: #{tpu_custom_call.1} parent=1 // pred_check
      %p55 = pneg %p54
    $region27: #{tpu_custom_call.1} parent=1 // pred_check_branch
      %57 = sbr.rel (%p55) target = $region29
    $region28: #{tpu_custom_call.1} parent=1 // pred_region
      %vm58 = vcmask 785408
      %59 = vst.msk [vmem:[#allocation2] sm:$0xff] %vm58, 0.0
      %60 = vst.msk [vmem:[#allocation2 + $0x8] sm:$0xff] %vm58, 0.0
    $region29: #{tpu_custom_call.1} parent=1 // pred_fallthru
      _
    %v61 = vld [vmem:[#allocation2] sm:$0xff]
    %v62 = vld [vmem:[#allocation2 + $0x8] sm:$0xff]
    %v63 = vld [vmem:[#allocation3] sm:$0xff]
    %v64 = vld [vmem:[#allocation3 + $0x8] sm:$0xff]
    %v65 = vld [vmem:[#allocation6] sm:$0xff]
    %v66 = vld [vmem:[#allocation6 + $0x8] sm:$0xff]
    %v67 = vld [vmem:[#allocation6 + $0x10] sm:$0xff]
    %v68 = vld [vmem:[#allocation6 + $0x18] sm:$0xff]
    %vm69 = vcmask 261120
    %v71 = vsel %vm69, %v63, 0
    %v74 = vsel %vm69, %v64, 0
    %76 = vmatprep.subr.mxu0 0.0
    %77 = vmatpush1.msra.mxu0 %v65
    %78 = vmatprep.subr.mxu0 0.0
    %79 = vmatpush1.msra.mxu0 %v66
    %80 = vmatprep.subr.mxu0 0.0
    %81 = vmatpush1.msra.mxu0 %v67
    %82 = vmatprep.subr.mxu0 0.0
    %83 = vmatpush1.msra.mxu0 %v68
    %84 = vmatprep.subr.mxu0 0.0
    %85 = vmatpush1.msra.mxu0 0.0
    %86 = vmatprep.subr.mxu0 0.0
    %87 = vmatpush1.msra.mxu0 0.0
    %88 = vmatprep.subr.mxu0 0.0
    %89 = vmatpush1.msra.mxu0 0.0
    %90 = vmatprep.subr.mxu0 0.0
    %91 = vmatpush1.msra.mxu0 0.0
    %92 = vmatprep.subr.mxu0 0.0
    %93 = vmatpush1.msra.mxu0 0.0
    %94 = vmatprep.subr.mxu0 0.0
    %95 = vmatpush1.msra.mxu0 0.0
    %96 = vmatprep.subr.mxu0 0.0
    %97 = vmatpush1.msra.mxu0 0.0
    %98 = vmatprep.subr.mxu0 0.0
    %99 = vmatpush1.msra.mxu0 0.0
    %100 = vmatprep.subr.mxu0 0.0
    %101 = vmatpush1.msra.mxu0 0.0
    %102 = vmatprep.subr.mxu0 0.0
    %103 = vmatpush1.msra.mxu0 0.0
    %104 = vmatprep.subr.mxu0 0.0
    %105 = vmatpush1.msra.mxu0 0.0
    %106 = vmatprep.subr.mxu0 0.0
    %107 = vmatpush1.msra.mxu0 0.0
    %108 = vmatprep.subr.mxu0 0.0
    %109 = vmatpush1.msra.mxu0 0.0
    %110 = vmatprep.subr.mxu0 0.0
    %111 = vmatpush1.msra.mxu0 0.0
    %112 = vmatprep.subr.mxu0 0.0
    %113 = vmatpush1.msra.mxu0 0.0
    %114 = vmatprep.subr.mxu0 0.0
    %115 = vmatpush1.msra.mxu0 0.0
    %116 = vmatprep.subr.mxu0 0.0
    %117 = vmatpush1.msra.mxu0 0.0
    %118 = vmatprep.subr.mxu0 0.0
    %119 = vmatpush1.msra.mxu0 0.0
    %120 = vmatprep.subr.mxu0 0.0
    %121 = vmatpush1.msra.mxu0 0.0
    %122 = vmatprep.subr.mxu0 0.0
    %123 = vmatpush1.msra.mxu0 0.0
    %124 = vmatprep.subr.mxu0 0.0
    %125 = vmatpush1.msra.mxu0 0.0
    %126 = vmatprep.subr.mxu0 0.0
    %127 = vmatpush1.msra.mxu0 0.0
    %128 = vmatprep.subr.mxu0 0.0
    %129 = vmatpush1.msra.mxu0 0.0
    %130 = vmatprep.subr.mxu0 0.0
    %131 = vmatpush1.msra.mxu0 0.0
    %132 = vmatprep.subr.mxu0 0.0
    %133 = vmatpush1.msra.mxu0 0.0
    %134 = vmatprep.subr.mxu0 0.0
    %135 = vmatpush1.msra.mxu0 0.0
    %136 = vmatprep.subr.mxu0 0.0
    %137 = vmatpush1.msra.mxu0 0.0
    %138 = vmatprep.subr.mxu0 0.0
    %139 = vmatpush1.msra.mxu0 0.0
    %140 = vmatprep.mubr.f32.mxu0 0.0
    %141 = vmatmul.mubr.f32.gmra.mrb[0].mxu0 %v71
    %v142 = vpop.f32.mrb[0].mxu0
    %v143 = vadd.f32 0.0, %v142
    %v144 = vpop.f32.mrb[0].mxu0
    %145 = vmatprep.mubr.f32.mxu0 0.0
    %146 = vmatmul.mubr.f32.gmra.mrb[0].mxu0 %v74
    %v147 = vpop.f32.mrb[0].mxu0
    %v148 = vadd.f32 0.0, %v147
    %v149 = vpop.f32.mrb[0].mxu0
    %150 = vdwg.mxu0
    %v151 = vadd.f32 %v61, %v143
    %v152 = vadd.f32 %v62, %v148
    %vm153 = vcmask 785408
    %154 = vst.msk [vmem:[#allocation2] sm:$0xff] %vm153, %v151
    %155 = vst.msk [vmem:[#allocation2 + $0x8] sm:$0xff] %vm153, %v152
    // Predicated region
    $region30: #{tpu_custom_call.1} parent=1 // pred_check
      %p156 = pneg %p54
    $region31: #{tpu_custom_call.1} parent=1 // pred_check_branch
      %158 = sbr.rel (%p156) target = $region33
    $region32: #{tpu_custom_call.1} parent=1 // pred_region
      %v159 = vld [vmem:[#allocation2] sm:$0xff]
      %v160 = vld [vmem:[#allocation2 + $0x8] sm:$0xff]
      %v161 = vld [vmem:[#allocation8] sm:$0x1]
      %v163 = vlaneseq
      %v164 = vshrl.u32 %v163, 7
      %v165 = vsub.s32 0, %v164
      %v166 = vrot.slane %v161, %v165
      %v168 = vadd.f32 %v159, %v166
      %v169 = vadd.f32 %v160, %v166
      %170 = vst.msk [vmem:[#allocation9] sm:$0xff] %vm153, %v168
      %171 = vst.msk [vmem:[#allocation9 + $0x8] sm:$0xff] %vm153, %v169
    $region33: #{tpu_custom_call.1} parent=1 // pred_fallthru
      _
    // Predicated region
    $region34: #{tpu_custom_call.1} parent=1 // pred_check
      _
    $region35: #{tpu_custom_call.1} parent=1 // pred_check_branch
      %173 = sbr.rel (0) target = $region37
    $region36: #{tpu_custom_call.1} parent=1 // pred_region
      %s175 = ssub.s32 256, 256
      %176 = vsyncadd [#allocation5], %s175
      %s177 = sshll.u32 [#allocation9], 4
      %s178 = int_to_ptr.vmem [resolvable:$true] %s177
      %183 = dma.vmem_to_hbm [thread:$0]  %s178, 256, %s3, [#allocation5], 128, 128, 8
    $region37: #{tpu_custom_call.1} parent=1 // pred_fallthru
      _
    // Predicated region
    $region38: #{tpu_custom_call.1} parent=1 // pred_check
      _
    $region39: #{tpu_custom_call.1} parent=1 // pred_check_branch
      %185 = sbr.rel (0) target = $region41
    $region40: #{tpu_custom_call.1} parent=1 // pred_region
      %186 = dma.done [#allocation5], 256
    $region41: #{tpu_custom_call.1} parent=1 // pred_fallthru
      _
    %187 = vsyncpa [#allocation4], 1
    %188 = vsyncpa [#allocation7], 1
    %189 = vsyncpa [#allocation5], 1

</llo_original>
